<compile_context>
chip_gen: v7x
topology: tpu7x:2x2x1
jax: 0.10.0
libtpu: 0.0.40
codegen_flags: <defaults>
</compile_context>

<pallas_src>
import functools

import jax
import jax.numpy as jnp
from jax.experimental import pallas as pl
from jax.experimental.pallas import tpu as pltpu

_NORM_EPS = 1e-12  # F.normalize default eps


def _avg_readout_kernel(mask_ref, emb_ref, out_ref, acc_ref, rsum_ref,
                        *, n_nodes, tk, ragged_k):
    # mask_ref: (tm, tk)  group-membership tile (rows = groups, cols = nodes)
    # emb_ref : (tk, D)   node-embedding tile
    # out_ref : (tm, D)   L2-normalized global embeddings
    # acc_ref : (tm, D)   f32 vsum accumulator (persists across k)
    # rsum_ref: (tm, 1)   f32 row-sum accumulator (persists across k)
    k = pl.program_id(1)

    @pl.when(k == 0)
    def _init():
        acc_ref[...] = jnp.zeros_like(acc_ref)
        rsum_ref[...] = jnp.zeros_like(rsum_ref)

    m = mask_ref[...]
    e = emb_ref[...]
    if ragged_k:
        # Last k block extends past N: the OOB region of the VMEM buffers
        # holds stale data, so zero those mask columns / emb rows.  Cheap VPU
        # selects, hidden under the HBM-bound emb stream.
        col = k * tk + jax.lax.broadcasted_iota(jnp.int32, m.shape, 1)
        m = jnp.where(col < n_nodes, m, jnp.zeros_like(m))
        row = k * tk + jax.lax.broadcasted_iota(jnp.int32, e.shape, 0)
        e = jnp.where(row < n_nodes, e, jnp.zeros_like(e))

    # vsum partial: MXU matmul, f32 accumulation.
    acc_ref[...] += jnp.dot(m, e, preferred_element_type=jnp.float32)
    # row_sum partial: cross-lane reduce on the XLU (separate issue slot).
    rsum_ref[...] += jnp.sum(m.astype(jnp.float32), axis=-1, keepdims=True)

    @pl.when(k == pl.num_programs(1) - 1)
    def _finalize():
        acc = acc_ref[...]
        rs = rsum_ref[...]
        # F.normalize(acc / rs, dim=1) == acc / max(||acc||, eps * rs).
        # The extra eps^2 floor only guards degenerate rs == 0 rows (e.g.
        # garbage rows of a ragged M tail, whose output is dropped anyway).
        sq = jnp.sum(acc * acc, axis=-1, keepdims=True)
        clamp = jnp.maximum(sq, jnp.maximum((_NORM_EPS * rs) ** 2,
                                            _NORM_EPS * _NORM_EPS))
        out_ref[...] = (acc * jax.lax.rsqrt(clamp)).astype(out_ref.dtype)


def _cdiv(a, b):
    return (a + b - 1) // b


def _round_up(x, m):
    return _cdiv(x, m) * m


def _balanced_tile(dim, max_tile, align):
    """Balanced tile <= max_tile; full extent if the dim fits in one block."""
    if dim <= max_tile:
        return dim  # full-extent block: always layout-legal, zero padding
    return _round_up(_cdiv(dim, _cdiv(dim, max_tile)), align)


@functools.partial(jax.jit, static_argnames=("tile_m", "tile_k"))
def avg_readout(emb, mask, *, tile_m=256, tile_k=1024):
    """AvgReadout forward.  emb: (N, D); mask: (M, N).  Returns (M, D)."""
    N, D = emb.shape
    M, N2 = mask.shape
    assert N2 == N, (mask.shape, emb.shape)

    # torch.mm requires matching dtypes; this also handles bool/int masks.
    mask = mask.astype(emb.dtype)

    tm = _balanced_tile(M, tile_m, 8)
    tk = _balanced_tile(N, tile_k, 128)

    esz = jnp.dtype(emb.dtype).itemsize
    msz = jnp.dtype(mask.dtype).itemsize

    def footprint(tm_, tk_):
        return (2 * tm_ * tk_ * msz      # mask double buffer
                + 2 * tk_ * D * esz      # emb double buffer
                + 2 * tm_ * D * esz      # out double buffer
                + tm_ * D * 4            # f32 vsum accumulator
                + tm_ * 128 * 4)         # f32 row-sum accumulator (lane pad)

    # Shrink tiles until the pipeline fits a 36 MiB budget (safe on v7x's
    # 64 MiB physical VMEM; v5e/v6e have 128 MiB and are never the binding
    # constraint at these defaults).
    budget = 36 * 1024 * 1024
    while footprint(tm, tk) > budget and tk > 128:
        tk = max(128, _round_up(tk // 2, 128))
    while footprint(tm, tk) > budget and tm > 8:
        tm = max(8, _round_up(tm // 2, 8))
    # TODO(synk): for very large D on v7x, add a parallel D grid axis with a
    # second normalization pass (the row L2 norm spans all D tiles) to use
    # both TensorCores; unnecessary for typical AvgReadout hidden sizes.

    vmem_limit = min(48 * 1024 * 1024, footprint(tm, tk) + 8 * 1024 * 1024)

    kernel = functools.partial(_avg_readout_kernel, n_nodes=N, tk=tk,
                               ragged_k=(N % tk != 0))

    return pl.pallas_call(
        kernel,
        out_shape=jax.ShapeDtypeStruct((M, D), emb.dtype),
        grid_spec=pltpu.PrefetchScalarGridSpec(
            num_scalar_prefetch=0,
            grid=(_cdiv(M, tm), _cdiv(N, tk)),
            in_specs=[
                pl.BlockSpec((tm, tk), lambda i, k: (i, k)),   # mask tile
                pl.BlockSpec((tk, D), lambda i, k: (k, 0)),    # emb tile
            ],
            out_specs=pl.BlockSpec((tm, D), lambda i, k: (i, 0)),
            scratch_shapes=[
                pltpu.VMEM((tm, D), jnp.float32),   # vsum accumulator
                pltpu.VMEM((tm, 1), jnp.float32),   # row_sum accumulator
            ],
        ),
        compiler_params=pltpu.CompilerParams(
            dimension_semantics=("parallel", "arbitrary"),
            vmem_limit_bytes=vmem_limit,
        ),
    )(mask, emb)


def _reference(emb, mask):
    vsum = mask @ emb
    row_sum = jnp.sum(mask, axis=1, keepdims=True)
    g = vsum / row_sum
    nrm = jnp.maximum(jnp.sqrt(jnp.sum(g * g, axis=1, keepdims=True)), _NORM_EPS)
    return g / nrm


if __name__ == "__main__":
    key = jax.random.PRNGKey(0)
    k_emb, k_mask, k_emb2, k_mask2 = jax.random.split(key, 4)

    # Small shapes consistent with the module: 64 nodes, hidden=32, 4 groups.
    N, D, M = 64, 32, 4
    emb = jax.random.normal(k_emb, (N, D), jnp.float32)
    # Non-negative soft membership mask (strictly positive row sums).
    mask = jax.random.uniform(k_mask, (M, N), jnp.float32, minval=0.1, maxval=1.0)

    out = avg_readout(emb, mask)
    jax.block_until_ready(out)

    ref = _reference(emb, mask)
    assert out.shape == (M, D)
    assert jnp.allclose(out, ref, atol=1e-5, rtol=1e-5), (
        float(jnp.max(jnp.abs(out - ref))))

    # Ragged-N / multi-k-step path (exercises the in-kernel tail masking).
    N2, D2, M2 = 200, 32, 5
    emb2 = jax.random.normal(k_emb2, (N2, D2), jnp.float32)
    mask2 = jax.random.uniform(k_mask2, (M2, N2), jnp.float32,
                               minval=0.1, maxval=1.0)
    out2 = avg_readout(emb2, mask2, tile_k=128)
    jax.block_until_ready(out2)
    ref2 = _reference(emb2, mask2)
    assert jnp.allclose(out2, ref2, atol=1e-5, rtol=1e-5), (
        float(jnp.max(jnp.abs(out2 - ref2))))

    print("KERNEL_OK")
</pallas_src>

<mosaic_0001>
module attributes {stable_mosaic.version = 11 : i64} {
  func.func @_avg_readout_kernel(%arg0: i32, %arg1: i32, %arg2: memref<4x64xf32, #tpu.memory_space<vmem>>, %arg3: memref<64x32xf32, #tpu.memory_space<vmem>>, %arg4: memref<4x32xf32, #tpu.memory_space<vmem>>, %arg5: memref<4x32xf32, #tpu.memory_space<vmem>>, %arg6: memref<4x1xf32, #tpu.memory_space<vmem>>) attributes {dimension_semantics = [#tpu.dimension_semantics<parallel>, #tpu.dimension_semantics<arbitrary>], iteration_bounds = array<i64: 1, 1>, scalar_prefetch = 0 : i64, scratch_operands = 2 : i64, tpu.core_type = #tpu.core_type<tc>, window_params = [{transform_indices = @transform_0, window_bounds = array<i64: 4, 64>}, {transform_indices = @transform_1, window_bounds = array<i64: 64, 32>}, {transform_indices = @transform_2, window_bounds = array<i64: 4, 32>}]} {
    %c0_i32 = arith.constant 0 : i32
    %0 = arith.cmpi eq, %arg1, %c0_i32 : i32
    %1 = arith.extui %0 : i1 to i32
    %c0_i32_0 = arith.constant 0 : i32
    %2 = arith.cmpi ne, %1, %c0_i32_0 : i32
    scf.if %2 {
      %cst_15 = arith.constant 0.000000e+00 : f32
      %17 = vector.broadcast %cst_15 : f32 to vector<4x32xf32>
      %c0_16 = arith.constant 0 : index
      %c0_17 = arith.constant 0 : index
      %18 = vector.load %arg5[%c0_16, %c0_17] : memref<4x32xf32, #tpu.memory_space<vmem>>, vector<4x32xf32>
      tpu.vector_store %arg5[%c0_16, %c0_17], %17 {strides = array<i32>} : memref<4x32xf32, #tpu.memory_space<vmem>>, vector<4x32xf32>,
      %cst_18 = arith.constant 0.000000e+00 : f32
      %19 = vector.broadcast %cst_18 : f32 to vector<4x1xf32>
      %c0_19 = arith.constant 0 : index
      %c0_20 = arith.constant 0 : index
      %20 = vector.load %arg6[%c0_19, %c0_20] : memref<4x1xf32, #tpu.memory_space<vmem>>, vector<4x1xf32>
      tpu.vector_store %arg6[%c0_19, %c0_20], %19 {strides = array<i32>} : memref<4x1xf32, #tpu.memory_space<vmem>>, vector<4x1xf32>,
    } else {
    }
    %c0 = arith.constant 0 : index
    %c0_1 = arith.constant 0 : index
    %3 = vector.load %arg2[%c0, %c0_1] : memref<4x64xf32, #tpu.memory_space<vmem>>, vector<4x64xf32>
    %c0_2 = arith.constant 0 : index
    %c0_3 = arith.constant 0 : index
    %4 = vector.load %arg3[%c0_2, %c0_3] : memref<64x32xf32, #tpu.memory_space<vmem>>, vector<64x32xf32>
    %c0_4 = arith.constant 0 : index
    %c0_5 = arith.constant 0 : index
    %5 = vector.load %arg5[%c0_4, %c0_5] : memref<4x32xf32, #tpu.memory_space<vmem>>, vector<4x32xf32>
    %cst = arith.constant dense<0.000000e+00> : vector<4x32xf32>
    %6 = tpu.matmul %3, %4, %cst {dimension_numbers = #tpu.dot_dimension_numbers<[1], [0], [0], [1], [0, 0, 1, 1], [], []>} : vector<4x64xf32>, vector<64x32xf32>, vector<4x32xf32> -> vector<4x32xf32>
    %7 = arith.addf %5, %6 : vector<4x32xf32>
    %c0_6 = arith.constant 0 : index
    %c0_7 = arith.constant 0 : index
    %8 = vector.load %arg5[%c0_6, %c0_7] : memref<4x32xf32, #tpu.memory_space<vmem>>, vector<4x32xf32>
    tpu.vector_store %arg5[%c0_6, %c0_7], %7 {strides = array<i32>} : memref<4x32xf32, #tpu.memory_space<vmem>>, vector<4x32xf32>,
    %c0_8 = arith.constant 0 : index
    %c0_9 = arith.constant 0 : index
    %9 = vector.load %arg6[%c0_8, %c0_9] : memref<4x1xf32, #tpu.memory_space<vmem>>, vector<4x1xf32>
    %cst_10 = arith.constant dense<0.000000e+00> : vector<4xf32>
    %10 = vector.multi_reduction <add>, %3, %cst_10 [1] : vector<4x64xf32> to vector<4xf32>
    %11 = vector.shape_cast %10 : vector<4xf32> to vector<4x1xf32>
    %12 = arith.addf %9, %11 : vector<4x1xf32>
    %c0_11 = arith.constant 0 : index
    %c0_12 = arith.constant 0 : index
    %13 = vector.load %arg6[%c0_11, %c0_12] : memref<4x1xf32, #tpu.memory_space<vmem>>, vector<4x1xf32>
    tpu.vector_store %arg6[%c0_11, %c0_12], %12 {strides = array<i32>} : memref<4x1xf32, #tpu.memory_space<vmem>>, vector<4x1xf32>,
    %c0_i32_13 = arith.constant 0 : i32
    %14 = arith.cmpi eq, %arg1, %c0_i32_13 : i32
    %15 = arith.extui %14 : i1 to i32
    %c0_i32_14 = arith.constant 0 : i32
    %16 = arith.cmpi ne, %15, %c0_i32_14 : i32
    scf.if %16 {
      %c0_15 = arith.constant 0 : index
      %c0_16 = arith.constant 0 : index
      %17 = vector.load %arg5[%c0_15, %c0_16] : memref<4x32xf32, #tpu.memory_space<vmem>>, vector<4x32xf32>
      %c0_17 = arith.constant 0 : index
      %c0_18 = arith.constant 0 : index
      %18 = vector.load %arg6[%c0_17, %c0_18] : memref<4x1xf32, #tpu.memory_space<vmem>>, vector<4x1xf32>
      %19 = arith.mulf %17, %17 : vector<4x32xf32>
      %cst_19 = arith.constant dense<0.000000e+00> : vector<4xf32>
      %20 = vector.multi_reduction <add>, %19, %cst_19 [1] : vector<4x32xf32> to vector<4xf32>
      %21 = vector.shape_cast %20 : vector<4xf32> to vector<4x1xf32>
      %cst_20 = arith.constant 9.99999996E-13 : f32
      %22 = vector.broadcast %cst_20 : f32 to vector<4x1xf32>
      %23 = arith.mulf %22, %18 : vector<4x1xf32>
      %24 = arith.mulf %23, %23 : vector<4x1xf32>
      %cst_21 = arith.constant 1.000000e-24 : f32
      %25 = vector.broadcast %cst_21 : f32 to vector<4x1xf32>
      %26 = arith.maximumf %24, %25 : vector<4x1xf32>
      %27 = arith.maximumf %21, %26 : vector<4x1xf32>
      %28 = math.rsqrt %27 : vector<4x1xf32>
      %29 = vector.broadcast %28 : vector<4x1xf32> to vector<4x32xf32>
      %30 = arith.mulf %17, %29 : vector<4x32xf32>
      %c0_22 = arith.constant 0 : index
      %c0_23 = arith.constant 0 : index
      %31 = vector.load %arg4[%c0_22, %c0_23] : memref<4x32xf32, #tpu.memory_space<vmem>>, vector<4x32xf32>
      tpu.vector_store %arg4[%c0_22, %c0_23], %30 {strides = array<i32>} : memref<4x32xf32, #tpu.memory_space<vmem>>, vector<4x32xf32>,
    } else {
    }
    return
  }
  func.func @transform_0(%arg0: i32, %arg1: i32) -> (i32, i32) {
    %c0_i32 = arith.constant 0 : i32
    return %arg0, %arg1 : i32, i32
  }
  func.func @transform_1(%arg0: i32, %arg1: i32) -> (i32, i32) {
    %c0_i32 = arith.constant 0 : i32
    %c0_i32_0 = arith.constant 0 : i32
    return %arg1, %c0_i32 : i32, i32
  }
  func.func @transform_2(%arg0: i32, %arg1: i32) -> (i32, i32) {
    %c0_i32 = arith.constant 0 : i32
    %c0_i32_0 = arith.constant 0 : i32
    return %arg0, %c0_i32 : i32, i32
  }
}

</mosaic_0001>

<llo_original>
// kernel: avg_readout.1
$region0: #{avg_readout.1}
  #allocation0 [shape = 'u32[]', space=smem, size = 0x4, offset = 0x4, fixed_abs, tag = 'smem constant byte address 0x4 - core index']
  #allocation1 [shape = 'u32[144,128]{1,0:T(1,128)}', space=vmem, size = 0x12000, scoped, tag = 'internal scratch']
  #allocation2 [shape = 'f32[4,32]{1,0:T(4,128)}', space=vmem, size = 0x800, scoped, tag = 'scratch operand']
  #allocation3 [shape = 'f32[4,1]{1,0:T(4,128)}', space=vmem, size = 0x800, scoped, tag = 'scratch operand']
  %s0 = inlined_call_operand.vmem [shape: f32[4,64], index: 0, kind: input, shape index: {}]
  %s1 = inlined_call_operand.vmem [shape: f32[64,32], index: 1, kind: input, shape index: {}]
  %s2 = inlined_call_operand.hbm [shape: f32[4,32], index: 2, kind: output, shape index: {}]
  %s3 = sld [smem:[#allocation0]]
  $region26: #{avg_readout.1} parent=0
    _
  %s5 = ssub.s32 1, %s3
  %s6 = scalar_select 0, %s5, %s3
  $region1: #{avg_readout.1} parent=0
    #allocation4 [shape = 'u8[2048]{0}', space=vmem, size = 0x800, scoped, tag = 'output window, operand 0, single buffered']
    #allocation5 [shape = 's32[1]{0}', space=sflag, size = 0x4, scoped, tag = 'scoped memory for avg_readout.1']
    %7 = vsyncpa [#allocation5], 0
    // Predicated region
    $region2: #{avg_readout.1} parent=1 // pred_check
      _
    $region3: #{avg_readout.1} parent=1 // pred_check_branch
      %9 = sbr.rel (0) target = $region5
    $region4: #{avg_readout.1} parent=1 // pred_region
      _
    $region5: #{avg_readout.1} parent=1 // pred_fallthru
      _
    // Predicated region
    $region6: #{avg_readout.1} parent=1 // pred_check
      _
    $region7: #{avg_readout.1} parent=1 // pred_check_branch
      %11 = sbr.rel (0) target = $region9
    $region8: #{avg_readout.1} parent=1 // pred_region
      _
    $region9: #{avg_readout.1} parent=1 // pred_fallthru
      _
    %p12 = scmp.eq.s32.totalorder 0, 0
    // Predicated region
    $region10: #{avg_readout.1} parent=1 // pred_check
      %p13 = pneg %p12
    $region11: #{avg_readout.1} parent=1 // pred_check_branch
      %15 = sbr.rel (%p13) target = $region13
    $region12: #{avg_readout.1} parent=1 // pred_region
      %vm16 = vcmask 257024
      %17 = vst.msk [vmem:[#allocation2] sm:$0xf] %vm16, 0.0
      %vm18 = vcmask 3072
      %19 = vst.msk [vmem:[#allocation3] sm:$0xf] %vm18, 0.0
    $region13: #{avg_readout.1} parent=1 // pred_fallthru
      _
    %v20 = vld [vmem:[%s0] sm:$0xf]
    %v21 = vld [vmem:[%s1] sm:$0xff]
    %v22 = vld [vmem:[%s1 + $0x8] sm:$0xff]
    %v23 = vld [vmem:[%s1 + $0x10] sm:$0xff]
    %v24 = vld [vmem:[%s1 + $0x18] sm:$0xff]
    %v25 = vld [vmem:[%s1 + $0x20] sm:$0xff]
    %v26 = vld [vmem:[%s1 + $0x28] sm:$0xff]
    %v27 = vld [vmem:[%s1 + $0x30] sm:$0xff]
    %v28 = vld [vmem:[%s1 + $0x38] sm:$0xff]
    %v29 = vld [vmem:[#allocation2] sm:$0xf]
    %vm30 = vcmask 523264
    %v32 = vsel %vm30, %v20, 0
    %34 = vmatprep.subr.mxu0 0.0
    %35 = vmatpush1.msra.mxu0 %v21
    %36 = vmatprep.subr.mxu0 0.0
    %37 = vmatpush1.msra.mxu0 %v22
    %38 = vmatprep.subr.mxu0 0.0
    %39 = vmatpush1.msra.mxu0 %v23
    %40 = vmatprep.subr.mxu0 0.0
    %41 = vmatpush1.msra.mxu0 %v24
    %42 = vmatprep.subr.mxu0 0.0
    %43 = vmatpush1.msra.mxu0 %v25
    %44 = vmatprep.subr.mxu0 0.0
    %45 = vmatpush1.msra.mxu0 %v26
    %46 = vmatprep.subr.mxu0 0.0
    %47 = vmatpush1.msra.mxu0 %v27
    %48 = vmatprep.subr.mxu0 0.0
    %49 = vmatpush1.msra.mxu0 %v28
    %50 = vmatprep.subr.mxu0 0.0
    %51 = vmatpush1.msra.mxu0 0.0
    %52 = vmatprep.subr.mxu0 0.0
    %53 = vmatpush1.msra.mxu0 0.0
    %54 = vmatprep.subr.mxu0 0.0
    %55 = vmatpush1.msra.mxu0 0.0
    %56 = vmatprep.subr.mxu0 0.0
    %57 = vmatpush1.msra.mxu0 0.0
    %58 = vmatprep.subr.mxu0 0.0
    %59 = vmatpush1.msra.mxu0 0.0
    %60 = vmatprep.subr.mxu0 0.0
    %61 = vmatpush1.msra.mxu0 0.0
    %62 = vmatprep.subr.mxu0 0.0
    %63 = vmatpush1.msra.mxu0 0.0
    %64 = vmatprep.subr.mxu0 0.0
    %65 = vmatpush1.msra.mxu0 0.0
    %66 = vmatprep.subr.mxu0 0.0
    %67 = vmatpush1.msra.mxu0 0.0
    %68 = vmatprep.subr.mxu0 0.0
    %69 = vmatpush1.msra.mxu0 0.0
    %70 = vmatprep.subr.mxu0 0.0
    %71 = vmatpush1.msra.mxu0 0.0
    %72 = vmatprep.subr.mxu0 0.0
    %73 = vmatpush1.msra.mxu0 0.0
    %74 = vmatprep.subr.mxu0 0.0
    %75 = vmatpush1.msra.mxu0 0.0
    %76 = vmatprep.subr.mxu0 0.0
    %77 = vmatpush1.msra.mxu0 0.0
    %78 = vmatprep.subr.mxu0 0.0
    %79 = vmatpush1.msra.mxu0 0.0
    %80 = vmatprep.subr.mxu0 0.0
    %81 = vmatpush1.msra.mxu0 0.0
    %82 = vmatprep.subr.mxu0 0.0
    %83 = vmatpush1.msra.mxu0 0.0
    %84 = vmatprep.subr.mxu0 0.0
    %85 = vmatpush1.msra.mxu0 0.0
    %86 = vmatprep.subr.mxu0 0.0
    %87 = vmatpush1.msra.mxu0 0.0
    %88 = vmatprep.subr.mxu0 0.0
    %89 = vmatpush1.msra.mxu0 0.0
    %90 = vmatprep.subr.mxu0 0.0
    %91 = vmatpush1.msra.mxu0 0.0
    %92 = vmatprep.subr.mxu0 0.0
    %93 = vmatpush1.msra.mxu0 0.0
    %94 = vmatprep.subr.mxu0 0.0
    %95 = vmatpush1.msra.mxu0 0.0
    %96 = vmatprep.subr.mxu0 0.0
    %97 = vmatpush1.msra.mxu0 0.0
    %98 = vmatprep.mubr.f32.mxu0 0.0
    %99 = vmatmul.mubr.f32.gmra.mrb[0].mxu0 %v32
    %v100 = vpop.f32.mrb[0].mxu0
    %v101 = vadd.f32 0.0, %v100
    %v102 = vpop.f32.mrb[0].mxu0
    %103 = vdwg.mxu0
    %v104 = vadd.f32 %v29, %v101
    %vm105 = vcmask 257024
    %106 = vst.msk [vmem:[#allocation2] sm:$0xf] %vm105, %v104
    %v107 = vld [vmem:[#allocation3] sm:$0xf]
    %vm108 = vcmask 519168
    %v109 = vsel %vm108, %v20, 0.0
    %110 = vadd.xlane.f32.xlu0 %v109
    %v111 = vpop.xlane.xlu0 %110
    %v112 = vadd.f32 %v107, %v111
    %vm113 = vcmask 3072
    %114 = vst.msk [vmem:[#allocation3] sm:$0xf] %vm113, %v112
    // Predicated region
    $region14: #{avg_readout.1} parent=1 // pred_check
      %p115 = pneg %p12
    $region15: #{avg_readout.1} parent=1 // pred_check_branch
      %117 = sbr.rel (%p115) target = $region17
    $region16: #{avg_readout.1} parent=1 // pred_region
      %v118 = vld [vmem:[#allocation2] sm:$0xf]
      %v119 = vld [vmem:[#allocation3] sm:$0xf]
      %v120 = vmul.f32 %v118, %v118
      %v121 = vsel %vm105, %v120, 0.0
      %122 = vadd.xlane.f32.xlu0 %v121
      %v123 = vpop.xlane.xlu0 %122
      %v124 = vmul.f32 %v119, 1e-12
      %v125 = vmul.f32 %v124, %v124
      %v126 = vmax.f32 %v125, 1e-24
      %v127 = vmax.f32 %v123, %v126
      %v128 = vrsqrt.pop %v127
      %130 = vset.pattern.permute.xlu0 0
      %131 = vperm.xlu0 %130, %v128
      %v132 = vpop.permute.xlu0 %131
      %v134 = vmul.f32 %v118, %v132
      %135 = vst.msk [vmem:[#allocation4] sm:$0xf] %vm105, %v134
    $region17: #{avg_readout.1} parent=1 // pred_fallthru
      _
    // Predicated region
    $region18: #{avg_readout.1} parent=1 // pred_check
      _
    $region19: #{avg_readout.1} parent=1 // pred_check_branch
      %137 = sbr.rel (0) target = $region21
    $region20: #{avg_readout.1} parent=1 // pred_region
      %s139 = ssub.s32 64, 64
      %140 = vsyncadd [#allocation5], %s139
      %s142 = sshll.u32 [#allocation4], 4
      %s143 = int_to_ptr.vmem [resolvable:$true] %s142
      %145 = dma.vmem_to_hbm [thread:$0]  %s143, 64, %s2, [#allocation5]
    $region21: #{avg_readout.1} parent=1 // pred_fallthru
      _
    // Predicated region
    $region22: #{avg_readout.1} parent=1 // pred_check
      _
    $region23: #{avg_readout.1} parent=1 // pred_check_branch
      %147 = sbr.rel (0) target = $region25
    $region24: #{avg_readout.1} parent=1 // pred_region
      %148 = dma.done [#allocation5], 64
    $region25: #{avg_readout.1} parent=1 // pred_fallthru
      _
    %149 = vsyncpa [#allocation5], 1

</llo_original>
